<compile_context>
chip_gen: v5e
topology: v5e:2x2
jax: 0.10.0
libtpu: 0.0.40
codegen_flags: <defaults>
</compile_context>

<pallas_src>
import functools
import math

import jax
import jax.numpy as jnp
from jax.experimental import pallas as pl
from jax.experimental.pallas import tpu as pltpu


# ----------------------------------------------------------------------------
# Kernel
# ----------------------------------------------------------------------------
def _attention(q, k, v, kv_block, use_bf16_exp):
    """Single-head attention over a (bt, T, D) batch tile.

    q/k/v are bf16 (the 1/sqrt(D) scale is already folded into q's weights).
    Returns the normalised context in f32.
    """
    bt, T, D = q.shape
    f32 = jnp.float32
    bf16 = jnp.bfloat16
    exp_dtype = bf16 if use_bf16_exp else f32
    n_kv = T // kv_block

    if n_kv == 1:
        # Dense path (small T): one scores tile, plain max/exp/sum.
        s = jnp.einsum('bqd,bkd->bqk', q, k, preferred_element_type=f32)
        m = jnp.max(s, axis=-1, keepdims=True)
        p = jnp.exp((s - m).astype(exp_dtype))
        denom = jnp.sum(p, axis=-1, keepdims=True, dtype=f32)
        acc = jnp.einsum('bqk,bkd->bqd', p.astype(bf16), v,
                         preferred_element_type=f32)
    else:
        # Flash-style online softmax over key blocks: the (bt, T, kv_block)
        # scores/probs tile is the largest attention temporary.
        m = jnp.full((bt, T, 1), -jnp.inf, f32)
        denom = jnp.zeros((bt, T, 1), f32)
        acc = jnp.zeros((bt, T, D), f32)
        for i in range(n_kv):  # static unroll (T is compile-time)
            kb = k[:, i * kv_block:(i + 1) * kv_block, :]
            vb = v[:, i * kv_block:(i + 1) * kv_block, :]
            s = jnp.einsum('bqd,bkd->bqk', q, kb, preferred_element_type=f32)
            m_new = jnp.maximum(m, jnp.max(s, axis=-1, keepdims=True))
            alpha = jnp.exp(m - m_new)
            p = jnp.exp((s - m_new).astype(exp_dtype))
            denom = alpha * denom + jnp.sum(p, axis=-1, keepdims=True, dtype=f32)
            acc = alpha * acc + jnp.einsum('bqk,bkd->bqd', p.astype(bf16), vb,
                                           preferred_element_type=f32)
            m = m_new

    # Fold 1/denom AFTER the PV matmul (scales (T, D), not (T, T)).
    # approx=True -> EUP reciprocal (~1e-3 rel error; documented above).
    return acc * pl.reciprocal(denom, approx=True)


def _layernorm(h, gamma, beta, eps):
    """Single-pass moments; gamma folded into the rsqrt scale."""
    mu = jnp.mean(h, axis=-1, keepdims=True)
    ms = jnp.mean(h * h, axis=-1, keepdims=True)
    var = ms - mu * mu
    s = jax.lax.rsqrt(var + eps) * gamma          # (rows, D)
    return h * s + (beta - mu * s)


def fused_encoder_kernel(
    x_ref,                       # (bt, T, D)   f32  input activations (used at l == 0)
    wqkv_ref, bqkv_ref,          # (1, D, 3D) bf16 / (1, 1, 3D) f32  (Q cols pre-scaled)
    wo_ref,                      # (1, D, D)  bf16
    w1_ref, b1_ref,              # (1, D, F)  bf16 / (1, 1, F)  f32
    w2_ref,                      # (1, F, D)  bf16
    vecs_ref,                    # (1, 8, D)  f32  packed: bo,ln1_g,ln1_b,b_fc2,ln2_g,ln2_b
    o_ref,                       # (bt, T, D) f32  resident across the layer axis
    *, kv_block, use_bf16_exp,
):
    l = pl.program_id(1)

    # Layer 0: seed the VMEM-resident activation block from the input.
    @pl.when(l == 0)
    def _():
        o_ref[...] = x_ref[...]

    bt, T, D = o_ref.shape
    eps = 1e-5
    bf16 = jnp.bfloat16

    # Unpack the small per-layer vectors from the packed (8, D) slab.
    vecs = vecs_ref[0]
    bo = vecs[0:1, :]
    ln1_g = vecs[1:2, :]
    ln1_b = vecs[2:3, :]
    b_fc2 = vecs[3:4, :]
    ln2_g = vecs[4:5, :]
    ln2_b = vecs[5:6, :]

    x = o_ref[...]                               # (bt, T, D) f32
    xf = x.reshape(bt * T, D)

    # ---- fused QKV projection: one (bt*T, D) @ (D, 3D) MXU matmul ----------
    qkv = jnp.dot(xf.astype(bf16), wqkv_ref[0],
                  preferred_element_type=jnp.float32) + bqkv_ref[0]   # (bt*T, 3D)
    # 1/sqrt(D) is already folded into the Q columns of wqkv/bqkv.
    q = qkv[:, :D].astype(bf16).reshape(bt, T, D)
    k = qkv[:, D:2 * D].astype(bf16).reshape(bt, T, D)
    v = qkv[:, 2 * D:].astype(bf16).reshape(bt, T, D)

    # ---- single-head self attention (key-tiled online softmax) -------------
    ctx = _attention(q, k, v, kv_block, use_bf16_exp).reshape(bt * T, D)

    attn_out = jnp.dot(ctx.astype(bf16), wo_ref[0],
                       preferred_element_type=jnp.float32) + bo

    # ---- residual + LayerNorm 1 (post-norm), f32 ----------------------------
    h = _layernorm(xf + attn_out, ln1_g, ln1_b, eps)

    # ---- feed-forward -------------------------------------------------------
    f = jnp.dot(h.astype(bf16), w1_ref[0],
                preferred_element_type=jnp.float32) + b1_ref[0]
    f = jnp.maximum(f, 0.0)
    f = jnp.dot(f.astype(bf16), w2_ref[0],
                preferred_element_type=jnp.float32) + b_fc2

    # ---- residual + LayerNorm 2 ---------------------------------------------
    y = _layernorm(h + f, ln2_g, ln2_b, eps)

    # Carry to the next layer (same VMEM block; written back to HBM once the
    # batch-tile index advances / the grid finishes).
    o_ref[...] = y.reshape(bt, T, D)


# ----------------------------------------------------------------------------
# Host-side wrapper
# ----------------------------------------------------------------------------
def _default_batch_tile(B):
    """Largest divisor of B giving >= 2 grid tiles (megacore sharding on v7x)."""
    if B <= 1:
        return max(B, 1)
    for bt in range(B // 2, 0, -1):
        if B % bt == 0:
            return bt
    return 1


def _pick_kv_block(T):
    if T <= 512:
        return T
    for cand in (512, 256, 128):
        if T % cand == 0:
            return cand
    return T


def _use_bf16_exp_default():
    """bf16 VPU/EUP exists on v6e/v7x; keep f32 exp elsewhere (v5e, v4, ...)."""
    try:
        kind = jax.devices()[0].device_kind.lower()
    except Exception:
        return False
    return ("v6" in kind) or ("v7" in kind)


def _vmem_limit_bytes(bt, T, D, F, kv_block):
    """Budget: double-buffered inputs + resident output block + temporaries."""
    bf16, f32 = 2, 4
    weights = (3 * D * D + D * D + D * F + F * D) * bf16       # wqkv, wo, w1, w2
    vectors = (8 * D + 3 * D + F) * f32                        # vecs, bqkv, b_fc1
    x_blk = bt * T * D * f32
    o_blk = bt * T * D * f32
    tmp = (bt * T * 3 * D * f32            # qkv slab
           + 2 * bt * T * kv_block * f32   # scores + probs tile
           + bt * T * F * f32              # FFN hidden
           + 2 * bt * T * D * f32)         # ctx / residual temporaries
    budget = 2 * (weights + vectors + x_blk) + o_blk + tmp
    try:
        cap = int(pltpu.get_tpu_info().vmem_capacity_bytes)
    except Exception:
        cap = 64 * 1024 * 1024             # conservative (v7x per-TC)
    return min(cap, max(32 * 1024 * 1024, int(1.25 * budget)))


def transformer_encoder_forward(x_tbd, params, *, batch_tile=None, kv_block=None,
                                use_bf16_exp=None):
    """x_tbd: (T, B, D) like the PyTorch module. Returns (T, B, D).

    params: dict of per-layer weights stacked along a leading L axis (see
    init_stacked_params).  batch_tile: batch elements per grid step (must
    divide B); default gives >= 2 tiles so both v7x TensorCores get work while
    the stacked weights are re-streamed at most twice.
    """
    T, B, D = x_tbd.shape
    L = params["wqkv"].shape[0]
    F = params["w_fc1"].shape[-1]
    bt = _default_batch_tile(B) if batch_tile is None else batch_tile
    assert B % bt == 0, "batch_tile must divide B"
    kvb = _pick_kv_block(T) if kv_block is None else kv_block
    assert T % kvb == 0, "kv_block must divide T"
    if use_bf16_exp is None:
        use_bf16_exp = _use_bf16_exp_default()

    # Single layout change per forward (amortised over all L fused layers):
    # batch-leading layout gives lane-dense 2-D (bt*T, D) matmuls and a
    # batch-leading attention einsum in-kernel, with no per-layer HBM traffic.
    x_btd = jnp.transpose(x_tbd, (1, 0, 2))

    def wspec(shape):
        # Per-layer weight block: streams in along the (innermost) layer axis,
        # so default double-buffering overlaps next layer's weight DMA with
        # the current layer's compute.
        return pl.BlockSpec((1,) + shape, lambda b, l: (l, 0, 0))

    grid = (B // bt, L)
    kernel = functools.partial(fused_encoder_kernel,
                               kv_block=kvb, use_bf16_exp=use_bf16_exp)

    y_btd = pl.pallas_call(
        kernel,
        out_shape=jax.ShapeDtypeStruct((B, T, D), jnp.float32),
        grid_spec=pltpu.PrefetchScalarGridSpec(
            num_scalar_prefetch=0,
            grid=grid,
            in_specs=[
                pl.BlockSpec((bt, T, D), lambda b, l: (b, 0, 0)),   # x
                wspec((D, 3 * D)), wspec((1, 3 * D)),               # fused qkv (+bias)
                wspec((D, D)),                                      # out proj
                wspec((D, F)), wspec((1, F)),                       # fc1 (+bias)
                wspec((F, D)),                                      # fc2
                wspec((8, D)),                                      # packed bias/LN vecs
            ],
            # Constant over l -> activation block stays resident across layers.
            out_specs=pl.BlockSpec((bt, T, D), lambda b, l: (b, 0, 0)),
        ),
        compiler_params=pltpu.CompilerParams(
            # batch tiles are independent (megacore-parallel); layer axis is a
            # sequential carry.
            dimension_semantics=("parallel", "arbitrary"),
            vmem_limit_bytes=_vmem_limit_bytes(bt, T, D, F, kvb)),
    )(
        x_btd,
        params["wqkv"], params["bqkv"],
        params["wo"],
        params["w_fc1"], params["b_fc1"],
        params["w_fc2"],
        params["vecs"],
    )
    return jnp.transpose(y_btd, (1, 0, 2))


# ----------------------------------------------------------------------------
# Parameters
# ----------------------------------------------------------------------------
def init_stacked_params(key, num_layers, embed_dim, ffn_dim):
    """Per-layer params stacked along a leading L axis; matmul weights in bf16.

    The 1/sqrt(D) attention scale is folded into the Q columns of wqkv/bqkv,
    which is mathematically identical to scaling q in the forward pass.
    The 6 D-width vectors (bo, ln1_g, ln1_b, b_fc2, ln2_g, ln2_b) are packed
    into a single (L, 8, D) slab (2 rows of sublane padding).
    """
    D, F, L = embed_dim, ffn_dim, num_layers
    s_d = 1.0 / math.sqrt(D)
    s_f = 1.0 / math.sqrt(F)
    scale = 1.0 / math.sqrt(float(D))            # num_heads = 1 -> head_dim = D
    f32, bf16 = jnp.float32, jnp.bfloat16
    ks = jax.random.split(key, 12)

    wqkv = jax.random.normal(ks[0], (L, D, 3 * D), f32) * s_d
    bqkv = jax.random.normal(ks[1], (L, 1, 3 * D), f32) * 0.02
    # Fold the attention scale into the Q columns (weights AND bias).
    wqkv = wqkv.at[:, :, :D].multiply(scale)
    bqkv = bqkv.at[:, :, :D].multiply(scale)

    wo = jax.random.normal(ks[2], (L, D, D), f32) * s_d
    bo = jax.random.normal(ks[3], (L, D), f32) * 0.02
    ln1_g = 1.0 + 0.1 * jax.random.normal(ks[4], (L, D), f32)
    ln1_b = 0.1 * jax.random.normal(ks[5], (L, D), f32)
    w_fc1 = jax.random.normal(ks[6], (L, D, F), f32) * s_d
    b_fc1 = jax.random.normal(ks[7], (L, 1, F), f32) * 0.02
    w_fc2 = jax.random.normal(ks[8], (L, F, D), f32) * s_f
    b_fc2 = jax.random.normal(ks[9], (L, D), f32) * 0.02
    ln2_g = 1.0 + 0.1 * jax.random.normal(ks[10], (L, D), f32)
    ln2_b = 0.1 * jax.random.normal(ks[11], (L, D), f32)

    vecs = jnp.stack([bo, ln1_g, ln1_b, b_fc2, ln2_g, ln2_b], axis=1)  # (L, 6, D)
    vecs = jnp.pad(vecs, ((0, 0), (0, 2), (0, 0)))                     # (L, 8, D)

    return {
        "wqkv": wqkv.astype(bf16), "bqkv": bqkv,
        "wo": wo.astype(bf16),
        "w_fc1": w_fc1.astype(bf16), "b_fc1": b_fc1,
        "w_fc2": w_fc2.astype(bf16),
        "vecs": vecs,
    }


# ----------------------------------------------------------------------------
# Pure-JAX reference (exact softmax division, f32 exp; same bf16 matmul casts)
# ----------------------------------------------------------------------------
def _reference_forward(x_tbd, params):
    bf16, f32 = jnp.bfloat16, jnp.float32
    eps = 1e-5
    x = jnp.transpose(x_tbd, (1, 0, 2)).astype(f32)   # (B, T, D)
    L = params["wqkv"].shape[0]
    D = x.shape[-1]
    for l in range(L):
        bo = params["vecs"][l, 0][None, None, :]
        ln1_g = params["vecs"][l, 1][None, None, :]
        ln1_b = params["vecs"][l, 2][None, None, :]
        b_fc2 = params["vecs"][l, 3][None, None, :]
        ln2_g = params["vecs"][l, 4][None, None, :]
        ln2_b = params["vecs"][l, 5][None, None, :]

        qkv = jnp.einsum('btd,de->bte', x.astype(bf16), params["wqkv"][l],
                         preferred_element_type=f32) + params["bqkv"][l]
        q = qkv[..., :D].astype(bf16)             # scale already folded in
        k = qkv[..., D:2 * D].astype(bf16)
        v = qkv[..., 2 * D:].astype(bf16)
        s = jnp.einsum('bqd,bkd->bqk', q, k, preferred_element_type=f32)
        m = jnp.max(s, -1, keepdims=True)
        p = jnp.exp(s - m)
        den = jnp.sum(p, -1, keepdims=True)
        ctx = jnp.einsum('bqk,bkd->bqd', p.astype(bf16), v,
                         preferred_element_type=f32) / den
        a = jnp.einsum('btd,de->bte', ctx.astype(bf16), params["wo"][l],
                       preferred_element_type=f32) + bo
        h = x + a
        mu = h.mean(-1, keepdims=True)
        var = ((h - mu) ** 2).mean(-1, keepdims=True)
        h = (h - mu) * jax.lax.rsqrt(var + eps) * ln1_g + ln1_b
        f = jnp.einsum('btd,df->btf', h.astype(bf16), params["w_fc1"][l],
                       preferred_element_type=f32) + params["b_fc1"][l]
        f = jnp.maximum(f, 0.0)
        f = jnp.einsum('btf,fd->btd', f.astype(bf16), params["w_fc2"][l],
                       preferred_element_type=f32) + b_fc2
        y = h + f
        mu2 = y.mean(-1, keepdims=True)
        var2 = ((y - mu2) ** 2).mean(-1, keepdims=True)
        x = (y - mu2) * jax.lax.rsqrt(var2 + eps) * ln2_g + ln2_b
    return jnp.transpose(x, (1, 0, 2))


if __name__ == "__main__":
    # Small shapes consistent with the module's forward: x is (T, B, D).
    # NOTE: demo shapes only — for perf, use D, F multiples of 128 (256 on
    # v6e/v7x) and bt*T a multiple of the MXU row tile.
    T, B, D, FFN = 8, 2, 32, 64
    NUM_LAYERS = 2

    root = jax.random.PRNGKey(0)
    kx, kp = jax.random.split(root)
    x = jax.random.normal(kx, (T, B, D), jnp.float32)
    params = init_stacked_params(kp, NUM_LAYERS, D, FFN)

    y = transformer_encoder_forward(x, params)
    y = jax.block_until_ready(y)

    assert y.shape == (T, B, D)
    assert bool(jnp.all(jnp.isfinite(y)))

    y_ref = _reference_forward(x, params)
    # Tolerance covers bf16 matmuls, approx reciprocal and (on v6e/v7x)
    # bf16 exp; see the header comment.
    assert bool(jnp.allclose(y, y_ref, atol=3e-2, rtol=3e-2)), \
        float(jnp.max(jnp.abs(y - y_ref)))

    print("KERNEL_OK")
</pallas_src>

<mosaic_0001>
module attributes {stable_mosaic.version = 11 : i64} {
  func.func @fused_encoder_kernel(%arg0: i32, %arg1: i32, %arg2: memref<1x8x32xf32, #tpu.memory_space<vmem>>, %arg3: memref<1x32x96xbf16, #tpu.memory_space<vmem>>, %arg4: memref<1x1x96xf32, #tpu.memory_space<vmem>>, %arg5: memref<1x32x32xbf16, #tpu.memory_space<vmem>>, %arg6: memref<1x32x64xbf16, #tpu.memory_space<vmem>>, %arg7: memref<1x1x64xf32, #tpu.memory_space<vmem>>, %arg8: memref<1x64x32xbf16, #tpu.memory_space<vmem>>, %arg9: memref<1x8x32xf32, #tpu.memory_space<vmem>>, %arg10: memref<1x8x32xf32, #tpu.memory_space<vmem>>) attributes {dimension_semantics = [#tpu.dimension_semantics<parallel>, #tpu.dimension_semantics<arbitrary>], iteration_bounds = array<i64: 2, 2>, scalar_prefetch = 0 : i64, scratch_operands = 0 : i64, tpu.core_type = #tpu.core_type<tc>, window_params = [{transform_indices = @transform_0, window_bounds = array<i64: 1, 8, 32>}, {transform_indices = @transform_1, window_bounds = array<i64: 1, 32, 96>}, {transform_indices = @transform_2, window_bounds = array<i64: 1, 1, 96>}, {transform_indices = @transform_3, window_bounds = array<i64: 1, 32, 32>}, {transform_indices = @transform_4, window_bounds = array<i64: 1, 32, 64>}, {transform_indices = @transform_5, window_bounds = array<i64: 1, 1, 64>}, {transform_indices = @transform_6, window_bounds = array<i64: 1, 64, 32>}, {transform_indices = @transform_7, window_bounds = array<i64: 1, 8, 32>}, {transform_indices = @transform_8, window_bounds = array<i64: 1, 8, 32>}]} {
    %c0_i32 = arith.constant 0 : i32
    %0 = arith.cmpi eq, %arg1, %c0_i32 : i32
    %1 = arith.extui %0 : i1 to i32
    %c0_i32_0 = arith.constant 0 : i32
    %2 = arith.cmpi ne, %1, %c0_i32_0 : i32
    scf.if %2 {
      %c0_45 = arith.constant 0 : index
      %c0_46 = arith.constant 0 : index
      %c0_47 = arith.constant 0 : index
      %116 = vector.load %arg2[%c0_45, %c0_46, %c0_47] : memref<1x8x32xf32, #tpu.memory_space<vmem>>, vector<1x8x32xf32>
      %c0_48 = arith.constant 0 : index
      %c0_49 = arith.constant 0 : index
      %c0_50 = arith.constant 0 : index
      %117 = vector.load %arg10[%c0_48, %c0_49, %c0_50] : memref<1x8x32xf32, #tpu.memory_space<vmem>>, vector<1x8x32xf32>
      tpu.vector_store %arg10[%c0_48, %c0_49, %c0_50], %116 {strides = array<i32>} : memref<1x8x32xf32, #tpu.memory_space<vmem>>, vector<1x8x32xf32>,
    } else {
    }
    %c0 = arith.constant 0 : index
    %c0_1 = arith.constant 0 : index
    %c0_2 = arith.constant 0 : index
    %3 = vector.load %arg9[%c0, %c0_1, %c0_2] : memref<1x8x32xf32, #tpu.memory_space<vmem>>, vector<1x8x32xf32>
    %4 = vector.shape_cast %3 : vector<1x8x32xf32> to vector<8x32xf32>
    %5 = vector.extract_strided_slice %4 {offsets = [0, 0], sizes = [1, 32], strides = [1, 1]} : vector<8x32xf32> to vector<1x32xf32>
    %6 = vector.extract_strided_slice %4 {offsets = [1, 0], sizes = [1, 32], strides = [1, 1]} : vector<8x32xf32> to vector<1x32xf32>
    %7 = vector.extract_strided_slice %4 {offsets = [2, 0], sizes = [1, 32], strides = [1, 1]} : vector<8x32xf32> to vector<1x32xf32>
    %8 = vector.extract_strided_slice %4 {offsets = [3, 0], sizes = [1, 32], strides = [1, 1]} : vector<8x32xf32> to vector<1x32xf32>
    %9 = vector.extract_strided_slice %4 {offsets = [4, 0], sizes = [1, 32], strides = [1, 1]} : vector<8x32xf32> to vector<1x32xf32>
    %10 = vector.extract_strided_slice %4 {offsets = [5, 0], sizes = [1, 32], strides = [1, 1]} : vector<8x32xf32> to vector<1x32xf32>
    %c0_3 = arith.constant 0 : index
    %c0_4 = arith.constant 0 : index
    %c0_5 = arith.constant 0 : index
    %11 = vector.load %arg10[%c0_3, %c0_4, %c0_5] : memref<1x8x32xf32, #tpu.memory_space<vmem>>, vector<1x8x32xf32>
    %12 = vector.shape_cast %11 : vector<1x8x32xf32> to vector<8x32xf32>
    %13 = arith.truncf %12 : vector<8x32xf32> to vector<8x32xbf16>
    %c0_6 = arith.constant 0 : index
    %c0_7 = arith.constant 0 : index
    %c0_8 = arith.constant 0 : index
    %14 = vector.load %arg3[%c0_6, %c0_7, %c0_8] : memref<1x32x96xbf16, #tpu.memory_space<vmem>>, vector<1x32x96xbf16>
    %15 = vector.shape_cast %14 : vector<1x32x96xbf16> to vector<32x96xbf16>
    %cst = arith.constant dense<0.000000e+00> : vector<8x96xf32>
    %16 = tpu.matmul %13, %15, %cst {dimension_numbers = #tpu.dot_dimension_numbers<[1], [0], [0], [1], [0, 0, 1, 1], [], []>} : vector<8x32xbf16>, vector<32x96xbf16>, vector<8x96xf32> -> vector<8x96xf32>
    %c0_9 = arith.constant 0 : index
    %c0_10 = arith.constant 0 : index
    %c0_11 = arith.constant 0 : index
    %17 = vector.load %arg4[%c0_9, %c0_10, %c0_11] : memref<1x1x96xf32, #tpu.memory_space<vmem>>, vector<1x1x96xf32>
    %18 = vector.shape_cast %17 : vector<1x1x96xf32> to vector<1x96xf32>
    %19 = vector.broadcast %18 : vector<1x96xf32> to vector<8x96xf32>
    %20 = arith.addf %16, %19 : vector<8x96xf32>
    %21 = vector.extract_strided_slice %20 {offsets = [0, 0], sizes = [8, 32], strides = [1, 1]} : vector<8x96xf32> to vector<8x32xf32>
    %22 = arith.truncf %21 : vector<8x32xf32> to vector<8x32xbf16>
    %23 = vector.shape_cast %22 : vector<8x32xbf16> to vector<1x8x32xbf16>
    %24 = vector.extract_strided_slice %20 {offsets = [0, 32], sizes = [8, 32], strides = [1, 1]} : vector<8x96xf32> to vector<8x32xf32>
    %25 = arith.truncf %24 : vector<8x32xf32> to vector<8x32xbf16>
    %26 = vector.shape_cast %25 : vector<8x32xbf16> to vector<1x8x32xbf16>
    %27 = vector.extract_strided_slice %20 {offsets = [0, 64], sizes = [8, 32], strides = [1, 1]} : vector<8x96xf32> to vector<8x32xf32>
    %28 = arith.truncf %27 : vector<8x32xf32> to vector<8x32xbf16>
    %29 = vector.shape_cast %28 : vector<8x32xbf16> to vector<1x8x32xbf16>
    "tpu.trace_start"() <{level = 10 : i32, message = "bqd,bkd->bqk"}> : () -> ()
    %cst_12 = arith.constant dense<0.000000e+00> : vector<1x8x8xf32>
    %30 = tpu.matmul %23, %26, %cst_12 {dimension_numbers = #tpu.dot_dimension_numbers<[2], [2], [1], [1], [0, 0, 0, 1, 1, 1], [0], [0]>} : vector<1x8x32xbf16>, vector<1x8x32xbf16>, vector<1x8x8xf32> -> vector<1x8x8xf32>
    "tpu.trace_stop"() : () -> ()
    %cst_13 = arith.constant dense<0xFF800000> : vector<1x8xf32>
    %31 = vector.multi_reduction <maximumf>, %30, %cst_13 [2] : vector<1x8x8xf32> to vector<1x8xf32>
    %32 = vector.shape_cast %31 : vector<1x8xf32> to vector<1x8x1xf32>
    %33 = vector.broadcast %32 : vector<1x8x1xf32> to vector<1x8x8xf32>
    %34 = arith.subf %30, %33 : vector<1x8x8xf32>
    %35 = math.exp %34 : vector<1x8x8xf32>
    %cst_14 = arith.constant dense<0.000000e+00> : vector<1x8xf32>
    %36 = vector.multi_reduction <add>, %35, %cst_14 [2] : vector<1x8x8xf32> to vector<1x8xf32>
    %37 = vector.shape_cast %36 : vector<1x8xf32> to vector<1x8x1xf32>
    %38 = arith.truncf %35 : vector<1x8x8xf32> to vector<1x8x8xbf16>
    "tpu.trace_start"() <{level = 10 : i32, message = "bqk,bkd->bqd"}> : () -> ()
    %cst_15 = arith.constant dense<0.000000e+00> : vector<1x8x32xf32>
    %39 = tpu.matmul %38, %29, %cst_15 {dimension_numbers = #tpu.dot_dimension_numbers<[2], [1], [1], [2], [0, 0, 0, 1, 1, 2], [0], [0]>} : vector<1x8x8xbf16>, vector<1x8x32xbf16>, vector<1x8x32xf32> -> vector<1x8x32xf32>
    "tpu.trace_stop"() : () -> ()
    %40 = tpu.reciprocal %37 {approx = true} : vector<1x8x1xf32> -> vector<1x8x1xf32>
    %41 = vector.broadcast %40 : vector<1x8x1xf32> to vector<1x8x32xf32>
    %42 = arith.mulf %39, %41 : vector<1x8x32xf32>
    %43 = vector.shape_cast %42 : vector<1x8x32xf32> to vector<8x32xf32>
    %44 = arith.truncf %43 : vector<8x32xf32> to vector<8x32xbf16>
    %c0_16 = arith.constant 0 : index
    %c0_17 = arith.constant 0 : index
    %c0_18 = arith.constant 0 : index
    %45 = vector.load %arg5[%c0_16, %c0_17, %c0_18] : memref<1x32x32xbf16, #tpu.memory_space<vmem>>, vector<1x32x32xbf16>
    %46 = vector.shape_cast %45 : vector<1x32x32xbf16> to vector<32x32xbf16>
    %cst_19 = arith.constant dense<0.000000e+00> : vector<8x32xf32>
    %47 = tpu.matmul %44, %46, %cst_19 {dimension_numbers = #tpu.dot_dimension_numbers<[1], [0], [0], [1], [0, 0, 1, 1], [], []>} : vector<8x32xbf16>, vector<32x32xbf16>, vector<8x32xf32> -> vector<8x32xf32>
    %48 = vector.broadcast %5 : vector<1x32xf32> to vector<8x32xf32>
    %49 = arith.addf %47, %48 : vector<8x32xf32>
    %50 = arith.addf %12, %49 : vector<8x32xf32>
    %cst_20 = arith.constant dense<0.000000e+00> : vector<8xf32>
    %51 = vector.multi_reduction <add>, %50, %cst_20 [1] : vector<8x32xf32> to vector<8xf32>
    %52 = vector.shape_cast %51 : vector<8xf32> to vector<8x1xf32>
    %cst_21 = arith.constant 3.200000e+01 : f32
    %53 = vector.broadcast %cst_21 : f32 to vector<8x1xf32>
    %54 = arith.divf %52, %53 : vector<8x1xf32>
    %55 = arith.mulf %50, %50 : vector<8x32xf32>
    %cst_22 = arith.constant dense<0.000000e+00> : vector<8xf32>
    %56 = vector.multi_reduction <add>, %55, %cst_22 [1] : vector<8x32xf32> to vector<8xf32>
    %57 = vector.shape_cast %56 : vector<8xf32> to vector<8x1xf32>
    %cst_23 = arith.constant 3.200000e+01 : f32
    %58 = vector.broadcast %cst_23 : f32 to vector<8x1xf32>
    %59 = arith.divf %57, %58 : vector<8x1xf32>
    %60 = arith.mulf %54, %54 : vector<8x1xf32>
    %61 = arith.subf %59, %60 : vector<8x1xf32>
    %cst_24 = arith.constant 9.99999974E-6 : f32
    %62 = vector.broadcast %cst_24 : f32 to vector<8x1xf32>
    %63 = arith.addf %61, %62 : vector<8x1xf32>
    %64 = math.rsqrt %63 : vector<8x1xf32>
    %65 = vector.broadcast %64 : vector<8x1xf32> to vector<8x32xf32>
    %66 = vector.broadcast %6 : vector<1x32xf32> to vector<8x32xf32>
    %67 = arith.mulf %65, %66 : vector<8x32xf32>
    %68 = arith.mulf %50, %67 : vector<8x32xf32>
    %69 = vector.broadcast %54 : vector<8x1xf32> to vector<8x32xf32>
    %70 = arith.mulf %69, %67 : vector<8x32xf32>
    %71 = vector.broadcast %7 : vector<1x32xf32> to vector<8x32xf32>
    %72 = arith.subf %71, %70 : vector<8x32xf32>
    %73 = arith.addf %68, %72 : vector<8x32xf32>
    %74 = arith.truncf %73 : vector<8x32xf32> to vector<8x32xbf16>
    %c0_25 = arith.constant 0 : index
    %c0_26 = arith.constant 0 : index
    %c0_27 = arith.constant 0 : index
    %75 = vector.load %arg6[%c0_25, %c0_26, %c0_27] : memref<1x32x64xbf16, #tpu.memory_space<vmem>>, vector<1x32x64xbf16>
    %76 = vector.shape_cast %75 : vector<1x32x64xbf16> to vector<32x64xbf16>
    %cst_28 = arith.constant dense<0.000000e+00> : vector<8x64xf32>
    %77 = tpu.matmul %74, %76, %cst_28 {dimension_numbers = #tpu.dot_dimension_numbers<[1], [0], [0], [1], [0, 0, 1, 1], [], []>} : vector<8x32xbf16>, vector<32x64xbf16>, vector<8x64xf32> -> vector<8x64xf32>
    %c0_29 = arith.constant 0 : index
    %c0_30 = arith.constant 0 : index
    %c0_31 = arith.constant 0 : index
    %78 = vector.load %arg7[%c0_29, %c0_30, %c0_31] : memref<1x1x64xf32, #tpu.memory_space<vmem>>, vector<1x1x64xf32>
    %79 = vector.shape_cast %78 : vector<1x1x64xf32> to vector<1x64xf32>
    %80 = vector.broadcast %79 : vector<1x64xf32> to vector<8x64xf32>
    %81 = arith.addf %77, %80 : vector<8x64xf32>
    %cst_32 = arith.constant 0.000000e+00 : f32
    %82 = vector.broadcast %cst_32 : f32 to vector<8x64xf32>
    %83 = arith.maximumf %81, %82 : vector<8x64xf32>
    %84 = arith.truncf %83 : vector<8x64xf32> to vector<8x64xbf16>
    %c0_33 = arith.constant 0 : index
    %c0_34 = arith.constant 0 : index
    %c0_35 = arith.constant 0 : index
    %85 = vector.load %arg8[%c0_33, %c0_34, %c0_35] : memref<1x64x32xbf16, #tpu.memory_space<vmem>>, vector<1x64x32xbf16>
    %86 = vector.shape_cast %85 : vector<1x64x32xbf16> to vector<64x32xbf16>
    %cst_36 = arith.constant dense<0.000000e+00> : vector<8x32xf32>
    %87 = tpu.matmul %84, %86, %cst_36 {dimension_numbers = #tpu.dot_dimension_numbers<[1], [0], [0], [1], [0, 0, 1, 1], [], []>} : vector<8x64xbf16>, vector<64x32xbf16>, vector<8x32xf32> -> vector<8x32xf32>
    %88 = vector.broadcast %8 : vector<1x32xf32> to vector<8x32xf32>
    %89 = arith.addf %87, %88 : vector<8x32xf32>
    %90 = arith.addf %73, %89 : vector<8x32xf32>
    %cst_37 = arith.constant dense<0.000000e+00> : vector<8xf32>
    %91 = vector.multi_reduction <add>, %90, %cst_37 [1] : vector<8x32xf32> to vector<8xf32>
    %92 = vector.shape_cast %91 : vector<8xf32> to vector<8x1xf32>
    %cst_38 = arith.constant 3.200000e+01 : f32
    %93 = vector.broadcast %cst_38 : f32 to vector<8x1xf32>
    %94 = arith.divf %92, %93 : vector<8x1xf32>
    %95 = arith.mulf %90, %90 : vector<8x32xf32>
    %cst_39 = arith.constant dense<0.000000e+00> : vector<8xf32>
    %96 = vector.multi_reduction <add>, %95, %cst_39 [1] : vector<8x32xf32> to vector<8xf32>
    %97 = vector.shape_cast %96 : vector<8xf32> to vector<8x1xf32>
    %cst_40 = arith.constant 3.200000e+01 : f32
    %98 = vector.broadcast %cst_40 : f32 to vector<8x1xf32>
    %99 = arith.divf %97, %98 : vector<8x1xf32>
    %100 = arith.mulf %94, %94 : vector<8x1xf32>
    %101 = arith.subf %99, %100 : vector<8x1xf32>
    %cst_41 = arith.constant 9.99999974E-6 : f32
    %102 = vector.broadcast %cst_41 : f32 to vector<8x1xf32>
    %103 = arith.addf %101, %102 : vector<8x1xf32>
    %104 = math.rsqrt %103 : vector<8x1xf32>
    %105 = vector.broadcast %104 : vector<8x1xf32> to vector<8x32xf32>
    %106 = vector.broadcast %9 : vector<1x32xf32> to vector<8x32xf32>
    %107 = arith.mulf %105, %106 : vector<8x32xf32>
    %108 = arith.mulf %90, %107 : vector<8x32xf32>
    %109 = vector.broadcast %94 : vector<8x1xf32> to vector<8x32xf32>
    %110 = arith.mulf %109, %107 : vector<8x32xf32>
    %111 = vector.broadcast %10 : vector<1x32xf32> to vector<8x32xf32>
    %112 = arith.subf %111, %110 : vector<8x32xf32>
    %113 = arith.addf %108, %112 : vector<8x32xf32>
    %114 = vector.shape_cast %113 : vector<8x32xf32> to vector<1x8x32xf32>
    %c0_42 = arith.constant 0 : index
    %c0_43 = arith.constant 0 : index
    %c0_44 = arith.constant 0 : index
    %115 = vector.load %arg10[%c0_42, %c0_43, %c0_44] : memref<1x8x32xf32, #tpu.memory_space<vmem>>, vector<1x8x32xf32>
    tpu.vector_store %arg10[%c0_42, %c0_43, %c0_44], %114 {strides = array<i32>} : memref<1x8x32xf32, #tpu.memory_space<vmem>>, vector<1x8x32xf32>,
    return
  }
  func.func @transform_0(%arg0: i32, %arg1: i32) -> (i32, i32, i32) {
    %c0_i32 = arith.constant 0 : i32
    %c0_i32_0 = arith.constant 0 : i32
    %c0_i32_1 = arith.constant 0 : i32
    return %arg0, %c0_i32, %c0_i32_0 : i32, i32, i32
  }
  func.func @transform_1(%arg0: i32, %arg1: i32) -> (i32, i32, i32) {
    %c0_i32 = arith.constant 0 : i32
    %c0_i32_0 = arith.constant 0 : i32
    %c0_i32_1 = arith.constant 0 : i32
    return %arg1, %c0_i32, %c0_i32_0 : i32, i32, i32
  }
  func.func @transform_2(%arg0: i32, %arg1: i32) -> (i32, i32, i32) {
    %c0_i32 = arith.constant 0 : i32
    %c0_i32_0 = arith.constant 0 : i32
    %c0_i32_1 = arith.constant 0 : i32
    return %arg1, %c0_i32, %c0_i32_0 : i32, i32, i32
  }
  func.func @transform_3(%arg0: i32, %arg1: i32) -> (i32, i32, i32) {
    %c0_i32 = arith.constant 0 : i32
    %c0_i32_0 = arith.constant 0 : i32
    %c0_i32_1 = arith.constant 0 : i32
    return %arg1, %c0_i32, %c0_i32_0 : i32, i32, i32
  }
  func.func @transform_4(%arg0: i32, %arg1: i32) -> (i32, i32, i32) {
    %c0_i32 = arith.constant 0 : i32
    %c0_i32_0 = arith.constant 0 : i32
    %c0_i32_1 = arith.constant 0 : i32
    return %arg1, %c0_i32, %c0_i32_0 : i32, i32, i32
  }
  func.func @transform_5(%arg0: i32, %arg1: i32) -> (i32, i32, i32) {
    %c0_i32 = arith.constant 0 : i32
    %c0_i32_0 = arith.constant 0 : i32
    %c0_i32_1 = arith.constant 0 : i32
    return %arg1, %c0_i32, %c0_i32_0 : i32, i32, i32
  }
  func.func @transform_6(%arg0: i32, %arg1: i32) -> (i32, i32, i32) {
    %c0_i32 = arith.constant 0 : i32
    %c0_i32_0 = arith.constant 0 : i32
    %c0_i32_1 = arith.constant 0 : i32
    return %arg1, %c0_i32, %c0_i32_0 : i32, i32, i32
  }
  func.func @transform_7(%arg0: i32, %arg1: i32) -> (i32, i32, i32) {
    %c0_i32 = arith.constant 0 : i32
    %c0_i32_0 = arith.constant 0 : i32
    %c0_i32_1 = arith.constant 0 : i32
    return %arg1, %c0_i32, %c0_i32_0 : i32, i32, i32
  }
  func.func @transform_8(%arg0: i32, %arg1: i32) -> (i32, i32, i32) {
    %c0_i32 = arith.constant 0 : i32
    %c0_i32_0 = arith.constant 0 : i32
    %c0_i32_1 = arith.constant 0 : i32
    return %arg0, %c0_i32, %c0_i32_0 : i32, i32, i32
  }
}

</mosaic_0001>

<llo_original>
// kernel: tpu_custom_call.1
$region0: #{tpu_custom_call.1}
  #allocation0 [shape = 'u32[]', space=smem, size = 0x4, offset = 0x4, fixed_abs, tag = 'smem constant byte address 0x4 - core index']
  #allocation1 [shape = 'u32[72,128]{1,0:T(1,128)}', space=vmem, size = 0x9000, scoped, tag = 'internal scratch']
  %s0 = inlined_call_operand.hbm [shape: f32[2,8,32], index: 0, kind: input, shape index: {}]
  %s1 = inlined_call_operand.vmem [shape: bf16[2,32,96], index: 1, kind: input, shape index: {}]
  %s2 = inlined_call_operand.hbm [shape: f32[2,1,96], index: 2, kind: input, shape index: {}]
  %s3 = inlined_call_operand.vmem [shape: bf16[2,32,32], index: 3, kind: input, shape index: {}]
  %s4 = inlined_call_operand.vmem [shape: bf16[2,32,64], index: 4, kind: input, shape index: {}]
  %s5 = inlined_call_operand.vmem [shape: f32[2,1,64], index: 5, kind: input, shape index: {}]
  %s6 = inlined_call_operand.vmem [shape: bf16[2,64,32], index: 6, kind: input, shape index: {}]
  %s7 = inlined_call_operand.hbm [shape: f32[2,8,32], index: 7, kind: input, shape index: {}]
  %s8 = inlined_call_operand.hbm [shape: f32[2,8,32], index: 8, kind: output, shape index: {}]
  %s9 = sld [smem:[#allocation0]]
  $region81: #{tpu_custom_call.1} parent=0
    _
  %s11 = ssub.s32 1, %s9
  %s12 = scalar_select 0, %s11, %s9
  $region1: #{tpu_custom_call.1} parent=0
    #allocation2 [shape = 'u8[8192]{0}', space=vmem, size = 0x2000, scoped, tag = 'input window, operand 0']
    #allocation3 [shape = 's32[2]{0}', space=sflag, size = 0x8, scoped, tag = 'scoped memory for tpu_custom_call.1']
    #allocation4 [shape = 's32[2]{0}', space=sflag, size = 0x8, scoped, tag = 'scoped memory for tpu_custom_call.1']
    #allocation5 [shape = 'u8[1024]{0}', space=vmem, size = 0x400, scoped, tag = 'input window, operand 2']
    #allocation6 [shape = 's32[2]{0}', space=sflag, size = 0x8, scoped, tag = 'scoped memory for tpu_custom_call.1']
    #allocation7 [shape = 'u8[8192]{0}', space=vmem, size = 0x2000, scoped, tag = 'input window, operand 7']
    #allocation8 [shape = 'u8[8192]{0}', space=vmem, size = 0x2000, scoped, tag = 'output window, operand 0']
    %13 = vsyncpa [#allocation3], 0
    %s14 = scalar_lea.sflag [#allocation3], 1
    %15 = vsyncpa %s14, 0
    %16 = vsyncpa [#allocation6], 0
    %s17 = scalar_lea.sflag [#allocation6], 1
    %18 = vsyncpa %s17, 0
    %19 = vsyncpa [#allocation4], 0
    %s20 = scalar_lea.sflag [#allocation4], 1
    %21 = vsyncpa %s20, 0
    loop: start=0, step=1, limit=6
    $region2: #{tpu_custom_call.1} parent=1 // loop_pre_header
      _
    $region3: #{tpu_custom_call.1} parent=1 // loop_header
      %s23 = sphi 0, %s27
      %p24 = scmp.ge.s32.totalorder %s23, 6
      %s30 = sphi 0, %s42
      %s31 = sphi 0, %s38
      %s32 = sphi 0, %s30
      %s33 = sphi 0, %s31
      %s34 = sphi 0, %s32
      %s35 = sphi 0, %s33
      %s45 = sphi 0, %s47
      %s48 = sphi 0, %s45
      %s49 = sphi 0, %s48
      %s65 = sphi 0, %s49
      %s71 = sphi 0, %s73
      %s74 = sphi 0, %s71
      %s75 = sphi 0, %s74
      %s91 = sphi 0, %s75
      %s97 = sphi 0, %s99
      %s100 = sphi 0, %s97
      %s101 = sphi 0, %s100
      %s117 = sphi 0, %s101
      %s123 = sphi 0, %s125
      %s126 = sphi 0, %s123
      %s127 = sphi 0, %s126
      %s143 = sphi 0, %s127
      %s149 = sphi 0, %s151
      %s152 = sphi 0, %s149
      %s153 = sphi 0, %s152
      %s169 = sphi 0, %s153
      %s175 = sphi 0, %s177
      %s178 = sphi 0, %s175
      %s179 = sphi 0, %s178
      %s195 = sphi 0, %s179
      %s201 = sphi 0, %s203
      %s204 = sphi 0, %s201
      %s205 = sphi 0, %s204
      %s221 = sphi 0, %s205
      %s227 = sphi 0, %s229
      %s230 = sphi 0, %s227
      %s231 = sphi 0, %s230
      %s247 = sphi 0, %s231
      %s253 = sphi 0, %s255
      %s256 = sphi 0, %s253
      %s257 = sphi 0, %s256
      %s273 = sphi 0, %s257
    $region4: #{tpu_custom_call.1} parent=1 // loop_header_branch
      %26 = sbr.rel (%p24) target = $region8
    $region5: #{tpu_custom_call.1} parent=1 // loop_body
      %s28 = ssub.s32 %s23, 1
      %s29 = ssub.s32 %s23, 2
      %s36 = sadd.s32 1, %s31
      %p37 = scmp.ge.s32.totalorder %s36, 2
      %s38 = scalar_select %p37, 0, %s36
      %s39 = sadd.s32 1, %s30
      %s40 = scalar_select %p37, %s39, %s30
      %p41 = scmp.ge.s32.totalorder %s40, 2
      %s42 = scalar_select %p41, 0, %s40
      %s43 = ssub.s32 %s30, %s42
      %p44 = scmp.eq.s32.totalorder %s43, 0
      %s46 = sadd.s32 %s45, 1
      %s47 = scalar_select %p44, %s45, %s46
      %p50 = pneg %p44
      %p51 = scmp.eq.s32.totalorder %s23, 3
      %p52 = por %p50, %p51
      %p53 = scmp.ne.s32.totalorder %s45, %s48
      %p54 = scmp.eq.s32.totalorder %s23, 0
      %p55 = por %p53, %p54
      %p56 = scmp.ne.s32.totalorder %s45, %s48
      %p57 = scmp.eq.s32.totalorder %s28, 3
      %p58 = por %p56, %p57
      %p59 = scmp.ne.s32.totalorder %s48, %s49
      %p60 = scmp.eq.s32.totalorder %s28, 0
      %p61 = por %p59, %p60
      %p62 = scmp.ne.s32.totalorder %s48, %s49
      %p63 = scmp.eq.s32.totalorder %s29, 3
      %p64 = por %p62, %p63
      %p66 = scmp.ne.s32.totalorder %s49, %s65
      %p67 = scmp.eq.s32.totalorder %s29, 0
      %p68 = por %p66, %p67
      %s69 = ssub.s32 %s31, %s38
      %p70 = scmp.eq.s32.totalorder %s69, 0
      %s72 = sadd.s32 %s71, 1
      %s73 = scalar_select %p70, %s71, %s72
      %p76 = pneg %p70
      %p77 = scmp.eq.s32.totalorder %s23, 3
      %p78 = por %p76, %p77
      %p79 = scmp.ne.s32.totalorder %s71, %s74
      %p80 = scmp.eq.s32.totalorder %s23, 0
      %p81 = por %p79, %p80
      %p82 = scmp.ne.s32.totalorder %s71, %s74
      %p83 = scmp.eq.s32.totalorder %s28, 3
      %p84 = por %p82, %p83
      %p85 = scmp.ne.s32.totalorder %s74, %s75
      %p86 = scmp.eq.s32.totalorder %s28, 0
      %p87 = por %p85, %p86
      %p88 = scmp.ne.s32.totalorder %s74, %s75
      %p89 = scmp.eq.s32.totalorder %s29, 3
      %p90 = por %p88, %p89
      %p92 = scmp.ne.s32.totalorder %s75, %s91
      %p93 = scmp.eq.s32.totalorder %s29, 0
      %p94 = por %p92, %p93
      %s95 = ssub.s32 %s31, %s38
      %p96 = scmp.eq.s32.totalorder %s95, 0
      %s98 = sadd.s32 %s97, 1
      %s99 = scalar_select %p96, %s97, %s98
      %p102 = pneg %p96
      %p103 = scmp.eq.s32.totalorder %s23, 3
      %p104 = por %p102, %p103
      %p105 = scmp.ne.s32.totalorder %s97, %s100
      %p106 = scmp.eq.s32.totalorder %s23, 0
      %p107 = por %p105, %p106
      %p108 = scmp.ne.s32.totalorder %s97, %s100
      %p109 = scmp.eq.s32.totalorder %s28, 3
      %p110 = por %p108, %p109
      %p111 = scmp.ne.s32.totalorder %s100, %s101
      %p112 = scmp.eq.s32.totalorder %s28, 0
      %p113 = por %p111, %p112
      %p114 = scmp.ne.s32.totalorder %s100, %s101
      %p115 = scmp.eq.s32.totalorder %s29, 3
      %p116 = por %p114, %p115
      %p118 = scmp.ne.s32.totalorder %s101, %s117
      %p119 = scmp.eq.s32.totalorder %s29, 0
      %p120 = por %p118, %p119
      %s121 = ssub.s32 %s31, %s38
      %p122 = scmp.eq.s32.totalorder %s121, 0
      %s124 = sadd.s32 %s123, 1
      %s125 = scalar_select %p122, %s123, %s124
      %p128 = pneg %p122
      %p129 = scmp.eq.s32.totalorder %s23, 3
      %p130 = por %p128, %p129
      %p131 = scmp.ne.s32.totalorder %s123, %s126
      %p132 = scmp.eq.s32.totalorder %s23, 0
      %p133 = por %p131, %p132
      %p134 = scmp.ne.s32.totalorder %s123, %s126
      %p135 = scmp.eq.s32.totalorder %s28, 3
      %p136 = por %p134, %p135
      %p137 = scmp.ne.s32.totalorder %s126, %s127
      %p138 = scmp.eq.s32.totalorder %s28, 0
      %p139 = por %p137, %p138
      %p140 = scmp.ne.s32.totalorder %s126, %s127
      %p141 = scmp.eq.s32.totalorder %s29, 3
      %p142 = por %p140, %p141
      %p144 = scmp.ne.s32.totalorder %s127, %s143
      %p145 = scmp.eq.s32.totalorder %s29, 0
      %p146 = por %p144, %p145
      %s147 = ssub.s32 %s31, %s38
      %p148 = scmp.eq.s32.totalorder %s147, 0
      %s150 = sadd.s32 %s149, 1
      %s151 = scalar_select %p148, %s149, %s150
      %p154 = pneg %p148
      %p155 = scmp.eq.s32.totalorder %s23, 3
      %p156 = por %p154, %p155
      %p157 = scmp.ne.s32.totalorder %s149, %s152
      %p158 = scmp.eq.s32.totalorder %s23, 0
      %p159 = por %p157, %p158
      %p160 = scmp.ne.s32.totalorder %s149, %s152
      %p161 = scmp.eq.s32.totalorder %s28, 3
      %p162 = por %p160, %p161
      %p163 = scmp.ne.s32.totalorder %s152, %s153
      %p164 = scmp.eq.s32.totalorder %s28, 0
      %p165 = por %p163, %p164
      %p166 = scmp.ne.s32.totalorder %s152, %s153
      %p167 = scmp.eq.s32.totalorder %s29, 3
      %p168 = por %p166, %p167
      %p170 = scmp.ne.s32.totalorder %s153, %s169
      %p171 = scmp.eq.s32.totalorder %s29, 0
      %p172 = por %p170, %p171
      %s173 = ssub.s32 %s31, %s38
      %p174 = scmp.eq.s32.totalorder %s173, 0
      %s176 = sadd.s32 %s175, 1
      %s177 = scalar_select %p174, %s175, %s176
      %p180 = pneg %p174
      %p181 = scmp.eq.s32.totalorder %s23, 3
      %p182 = por %p180, %p181
      %p183 = scmp.ne.s32.totalorder %s175, %s178
      %p184 = scmp.eq.s32.totalorder %s23, 0
      %p185 = por %p183, %p184
      %p186 = scmp.ne.s32.totalorder %s175, %s178
      %p187 = scmp.eq.s32.totalorder %s28, 3
      %p188 = por %p186, %p187
      %p189 = scmp.ne.s32.totalorder %s178, %s179
      %p190 = scmp.eq.s32.totalorder %s28, 0
      %p191 = por %p189, %p190
      %p192 = scmp.ne.s32.totalorder %s178, %s179
      %p193 = scmp.eq.s32.totalorder %s29, 3
      %p194 = por %p192, %p193
      %p196 = scmp.ne.s32.totalorder %s179, %s195
      %p197 = scmp.eq.s32.totalorder %s29, 0
      %p198 = por %p196, %p197
      %s199 = ssub.s32 %s31, %s38
      %p200 = scmp.eq.s32.totalorder %s199, 0
      %s202 = sadd.s32 %s201, 1
      %s203 = scalar_select %p200, %s201, %s202
      %p206 = pneg %p200
      %p207 = scmp.eq.s32.totalorder %s23, 3
      %p208 = por %p206, %p207
      %p209 = scmp.ne.s32.totalorder %s201, %s204
      %p210 = scmp.eq.s32.totalorder %s23, 0
      %p211 = por %p209, %p210
      %p212 = scmp.ne.s32.totalorder %s201, %s204
      %p213 = scmp.eq.s32.totalorder %s28, 3
      %p214 = por %p212, %p213
      %p215 = scmp.ne.s32.totalorder %s204, %s205
      %p216 = scmp.eq.s32.totalorder %s28, 0
      %p217 = por %p215, %p216
      %p218 = scmp.ne.s32.totalorder %s204, %s205
      %p219 = scmp.eq.s32.totalorder %s29, 3
      %p220 = por %p218, %p219
      %p222 = scmp.ne.s32.totalorder %s205, %s221
      %p223 = scmp.eq.s32.totalorder %s29, 0
      %p224 = por %p222, %p223
      %s225 = ssub.s32 %s31, %s38
      %p226 = scmp.eq.s32.totalorder %s225, 0
      %s228 = sadd.s32 %s227, 1
      %s229 = scalar_select %p226, %s227, %s228
      %p232 = pneg %p226
      %p233 = scmp.eq.s32.totalorder %s23, 3
      %p234 = por %p232, %p233
      %p235 = scmp.ne.s32.totalorder %s227, %s230
      %p236 = scmp.eq.s32.totalorder %s23, 0
      %p237 = por %p235, %p236
      %p238 = scmp.ne.s32.totalorder %s227, %s230
      %p239 = scmp.eq.s32.totalorder %s28, 3
      %p240 = por %p238, %p239
      %p241 = scmp.ne.s32.totalorder %s230, %s231
      %p242 = scmp.eq.s32.totalorder %s28, 0
      %p243 = por %p241, %p242
      %p244 = scmp.ne.s32.totalorder %s230, %s231
      %p245 = scmp.eq.s32.totalorder %s29, 3
      %p246 = por %p244, %p245
      %p248 = scmp.ne.s32.totalorder %s231, %s247
      %p249 = scmp.eq.s32.totalorder %s29, 0
      %p250 = por %p248, %p249
      %s251 = ssub.s32 %s30, %s42
      %p252 = scmp.eq.s32.totalorder %s251, 0
      %s254 = sadd.s32 %s253, 1
      %s255 = scalar_select %p252, %s253, %s254
      %p258 = pneg %p252
      %p259 = scmp.eq.s32.totalorder %s23, 3
      %p260 = por %p258, %p259
      %p261 = scmp.ne.s32.totalorder %s253, %s256
      %p262 = scmp.eq.s32.totalorder %s23, 0
      %p263 = por %p261, %p262
      %p264 = scmp.ne.s32.totalorder %s253, %s256
      %p265 = scmp.eq.s32.totalorder %s28, 3
      %p266 = por %p264, %p265
      %p267 = scmp.ne.s32.totalorder %s256, %s257
      %p268 = scmp.eq.s32.totalorder %s28, 0
      %p269 = por %p267, %p268
      %p270 = scmp.ne.s32.totalorder %s256, %s257
      %p271 = scmp.eq.s32.totalorder %s29, 3
      %p272 = por %p270, %p271
      %p274 = scmp.ne.s32.totalorder %s257, %s273
      %p275 = scmp.eq.s32.totalorder %s29, 0
      %p276 = por %p274, %p275
      %p277 = scmp.le.s32.totalorder 1, %s23
      %p278 = scmp.lt.s32.totalorder %s23, 5
      %p279 = pnand %p277, %p278
      %p280 = pneg %p279
      // Predicated region
      $region9: #{tpu_custom_call.1} parent=5 // pred_check
        _
      $region10: #{tpu_custom_call.1} parent=5 // pred_check_branch
        %282 = sbr.rel (%p279) target = $region12
      $region11: #{tpu_custom_call.1} parent=5 // pred_region
        %s283 = ssub.s32 %s23, 1
      $region12: #{tpu_custom_call.1} parent=5 // pred_fallthru
        _
      %p284 = scmp.lt.s32.totalorder %s23, 4
      // Predicated region
      $region13: #{tpu_custom_call.1} parent=5 // pred_check
        %p285 = pneg %p284
      $region14: #{tpu_custom_call.1} parent=5 // pred_check_branch
        %287 = sbr.rel (%p285) target = $region16
      $region15: #{tpu_custom_call.1} parent=5 // pred_region
        // Predicated region
        $region17: #{tpu_custom_call.1} parent=15 // pred_check
          %p288 = pneg %p55
        $region18: #{tpu_custom_call.1} parent=15 // pred_check_branch
          %290 = sbr.rel (%p288) target = $region20
        $region19: #{tpu_custom_call.1} parent=15 // pred_region
          %s291 = sand.u32 %s45, 1
          %s292 = scalar_lea.sflag [#allocation3], %s291
          %s293 = sand.u32 %s45, 1
          %s294 = smul.addr %s293, 8
          %s295 = scalar_lea.vmem [#allocation2], %s294
          %297 = vsyncadd %s292, 0
          %s298 = smul.addr %s30, 8
          %s299 = scalar_lea.hbm %s0, %s298
          %s301 = sshll.u32 %s299, 4
          %s302 = int_to_ptr.hbm [resolvable:$true] %s301
          %s303 = sshll.u32 %s295, 4
          %s304 = int_to_ptr.vmem [resolvable:$true] %s303
          %306 = dma.hbm_to_vmem [thread:$0]  %s302, 128, %s304, %s292
        $region20: #{tpu_custom_call.1} parent=15 // pred_fallthru
          _
        // Predicated region
        $region21: #{tpu_custom_call.1} parent=15 // pred_check
          %p307 = pneg %p81
        $region22: #{tpu_custom_call.1} parent=15 // pred_check_branch
          %309 = sbr.rel (%p307) target = $region24
        $region23: #{tpu_custom_call.1} parent=15 // pred_region
          %p310 = scmp.lt.s32.totalorder %s31, 1
          %s311 = scalar_select %p310, %s31, 1
          %s312 = smul.addr %s311, 4
          %s313 = smul.addr %s312, 4
          %s314 = scalar_lea.vmem %s1, %s313
        $region24: #{tpu_custom_call.1} parent=15 // pred_fallthru
          _
        // Predicated region
        $region25: #{tpu_custom_call.1} parent=15 // pred_check
          %p315 = pneg %p107
        $region26: #{tpu_custom_call.1} parent=15 // pred_check_branch
          %317 = sbr.rel (%p315) target = $region28
        $region27: #{tpu_custom_call.1} parent=15 // pred_region
          %s318 = sand.u32 %s23, 1
          %s319 = scalar_lea.sflag [#allocation6], %s318
          %s320 = sand.u32 %s97, 1
          %s321 = scalar_lea.vmem [#allocation5], %s320
          %323 = vsyncadd %s319, 0
          %s324 = scalar_lea.hbm %s2, %s31
          %s326 = sshll.u32 %s324, 4
          %s327 = int_to_ptr.hbm [resolvable:$true] %s326
          %s328 = sshll.u32 %s321, 4
          %s329 = int_to_ptr.vmem [resolvable:$true] %s328
          %331 = dma.hbm_to_vmem [thread:$0]  %s327, 16, %s329, %s319
        $region28: #{tpu_custom_call.1} parent=15 // pred_fallthru
          _
        // Predicated region
        $region29: #{tpu_custom_call.1} parent=15 // pred_check
          %p332 = pneg %p133
        $region30: #{tpu_custom_call.1} parent=15 // pred_check_branch
          %334 = sbr.rel (%p332) target = $region32
        $region31: #{tpu_custom_call.1} parent=15 // pred_region
          %p335 = scmp.lt.s32.totalorder %s31, 1
          %s336 = scalar_select %p335, %s31, 1
          %s337 = smul.addr %s336, 4
          %s338 = smul.addr %s337, 4
          %s339 = scalar_lea.vmem %s3, %s338
        $region32: #{tpu_custom_call.1} parent=15 // pred_fallthru
          _
        // Predicated region
        $region33: #{tpu_custom_call.1} parent=15 // pred_check
          %p340 = pneg %p159
        $region34: #{tpu_custom_call.1} parent=15 // pred_check_branch
          %342 = sbr.rel (%p340) target = $region36
        $region35: #{tpu_custom_call.1} parent=15 // pred_region
          %p343 = scmp.lt.s32.totalorder %s31, 1
          %s344 = scalar_select %p343, %s31, 1
          %s345 = smul.addr %s344, 4
          %s346 = smul.addr %s345, 4
          %s347 = scalar_lea.vmem %s4, %s346
        $region36: #{tpu_custom_call.1} parent=15 // pred_fallthru
          _
        // Predicated region
        $region37: #{tpu_custom_call.1} parent=15 // pred_check
          %p348 = pneg %p185
        $region38: #{tpu_custom_call.1} parent=15 // pred_check_branch
          %350 = sbr.rel (%p348) target = $region40
        $region39: #{tpu_custom_call.1} parent=15 // pred_region
          %p351 = scmp.lt.s32.totalorder %s31, 1
          %s352 = scalar_select %p351, %s31, 1
          %s353 = scalar_lea.vmem %s5, %s352
        $region40: #{tpu_custom_call.1} parent=15 // pred_fallthru
          _
        // Predicated region
        $region41: #{tpu_custom_call.1} parent=15 // pred_check
          %p354 = pneg %p211
        $region42: #{tpu_custom_call.1} parent=15 // pred_check_branch
          %356 = sbr.rel (%p354) target = $region44
        $region43: #{tpu_custom_call.1} parent=15 // pred_region
          %p357 = scmp.lt.s32.totalorder %s31, 1
          %s358 = scalar_select %p357, %s31, 1
          %s359 = smul.addr %s358, 8
          %s360 = smul.addr %s359, 4
          %s361 = scalar_lea.vmem %s6, %s360
        $region44: #{tpu_custom_call.1} parent=15 // pred_fallthru
          _
        // Predicated region
        $region45: #{tpu_custom_call.1} parent=15 // pred_check
          %p362 = pneg %p237
        $region46: #{tpu_custom_call.1} parent=15 // pred_check_branch
          %364 = sbr.rel (%p362) target = $region48
        $region47: #{tpu_custom_call.1} parent=15 // pred_region
          %s365 = sand.u32 %s23, 1
          %s366 = scalar_lea.sflag [#allocation6], %s365
          %s367 = sand.u32 %s227, 1
          %s368 = smul.addr %s367, 8
          %s369 = scalar_lea.vmem [#allocation7], %s368
          %371 = vsyncadd %s366, 0
          %s372 = smul.addr %s31, 8
          %s373 = scalar_lea.hbm %s7, %s372
          %s375 = sshll.u32 %s373, 4
          %s376 = int_to_ptr.hbm [resolvable:$true] %s375
          %s377 = sshll.u32 %s369, 4
          %s378 = int_to_ptr.vmem [resolvable:$true] %s377
          %380 = dma.hbm_to_vmem [thread:$0]  %s376, 128, %s378, %s366
        $region48: #{tpu_custom_call.1} parent=15 // pred_fallthru
          _
      $region16: #{tpu_custom_call.1} parent=5 // pred_fallthru
        _
      %p381 = scmp.le.s32.totalorder 1, %s23
      %p382 = scmp.lt.s32.totalorder %s23, 5
      %p383 = pnand %p381, %p382
      %p384 = pneg %p383
      // Predicated region
      $region49: #{tpu_custom_call.1} parent=5 // pred_check
        _
      $region50: #{tpu_custom_call.1} parent=5 // pred_check_branch
        %386 = sbr.rel (%p383) target = $region52
      $region51: #{tpu_custom_call.1} parent=5 // pred_region
        %s387 = ssub.s32 %s23, 1
        %s388 = sand.u32 %s48, 1
        %s389 = scalar_lea.sflag [#allocation3], %s388
        %s390 = sand.u32 %s48, 1
        %s391 = smul.addr %s390, 8
        %s392 = scalar_lea.vmem [#allocation2], %s391
        // Predicated region
        $region53: #{tpu_custom_call.1} parent=51 // pred_check
          %p393 = pneg %p61
        $region54: #{tpu_custom_call.1} parent=51 // pred_check_branch
          %395 = sbr.rel (%p393) target = $region56
        $region55: #{tpu_custom_call.1} parent=51 // pred_region
          %397 = dma.done %s389, 128
        $region56: #{tpu_custom_call.1} parent=51 // pred_fallthru
          _
        %s398 = sand.u32 %s28, 1
        %s399 = scalar_lea.sflag [#allocation6], %s398
        %s400 = sand.u32 %s100, 1
        %s401 = scalar_lea.vmem [#allocation5], %s400
        // Predicated region
        $region57: #{tpu_custom_call.1} parent=51 // pred_check
          %p402 = pneg %p113
        $region58: #{tpu_custom_call.1} parent=51 // pred_check_branch
          %404 = sbr.rel (%p402) target = $region60
        $region59: #{tpu_custom_call.1} parent=51 // pred_region
          %406 = dma.done %s399, 16
        $region60: #{tpu_custom_call.1} parent=51 // pred_fallthru
          _
        %s407 = sand.u32 %s28, 1
        %s408 = scalar_lea.sflag [#allocation6], %s407
        %s409 = sand.u32 %s230, 1
        %s410 = smul.addr %s409, 8
        %s411 = scalar_lea.vmem [#allocation7], %s410
        // Predicated region
        $region61: #{tpu_custom_call.1} parent=51 // pred_check
          %p412 = pneg %p243
        $region62: #{tpu_custom_call.1} parent=51 // pred_check_branch
          %414 = sbr.rel (%p412) target = $region64
        $region63: #{tpu_custom_call.1} parent=51 // pred_region
          %416 = dma.done %s408, 128
        $region64: #{tpu_custom_call.1} parent=51 // pred_fallthru
          _
        %s417 = sand.u32 %s48, 1
        %s418 = scalar_lea.sflag [#allocation3], %s417
        %s419 = sand.u32 %s48, 1
        %s420 = smul.addr %s419, 8
        %s421 = scalar_lea.vmem [#allocation2], %s420
        %p422 = pneg %p61
        %p423 = pneg %p58
        %p424 = scmp.lt.s32.totalorder %s33, 1
        %s425 = scalar_select %p424, %s33, 1
        %s426 = smul.addr %s425, 4
        %s427 = smul.addr %s426, 4
        %s428 = scalar_lea.vmem %s1, %s427
        %p429 = pneg %p87
        %p430 = pneg %p84
        %s431 = sand.u32 %s28, 1
        %s432 = scalar_lea.sflag [#allocation6], %s431
        %s433 = sand.u32 %s100, 1
        %s434 = scalar_lea.vmem [#allocation5], %s433
        %p435 = pneg %p113
        %p436 = pneg %p110
        %p437 = scmp.lt.s32.totalorder %s33, 1
        %s438 = scalar_select %p437, %s33, 1
        %s439 = smul.addr %s438, 4
        %s440 = smul.addr %s439, 4
        %s441 = scalar_lea.vmem %s3, %s440
        %p442 = pneg %p139
        %p443 = pneg %p136
        %p444 = scmp.lt.s32.totalorder %s33, 1
        %s445 = scalar_select %p444, %s33, 1
        %s446 = smul.addr %s445, 4
        %s447 = smul.addr %s446, 4
        %s448 = scalar_lea.vmem %s4, %s447
        %p449 = pneg %p165
        %p450 = pneg %p162
        %p451 = scmp.lt.s32.totalorder %s33, 1
        %s452 = scalar_select %p451, %s33, 1
        %s453 = scalar_lea.vmem %s5, %s452
        %p454 = pneg %p191
        %p455 = pneg %p188
        %p456 = scmp.lt.s32.totalorder %s33, 1
        %s457 = scalar_select %p456, %s33, 1
        %s458 = smul.addr %s457, 8
        %s459 = smul.addr %s458, 4
        %s460 = scalar_lea.vmem %s6, %s459
        %p461 = pneg %p217
        %p462 = pneg %p214
        %s463 = sand.u32 %s28, 1
        %s464 = scalar_lea.sflag [#allocation6], %s463
        %s465 = sand.u32 %s230, 1
        %s466 = smul.addr %s465, 8
        %s467 = scalar_lea.vmem [#allocation7], %s466
        %p468 = pneg %p243
        %p469 = pneg %p240
        %p470 = pneg %p269
        %p471 = pneg %p266
        %s472 = sand.u32 %s256, 1
        %s473 = scalar_lea.sflag [#allocation4], %s472
        %s474 = sand.u32 %s256, 1
        %s475 = smul.addr %s474, 8
        %s476 = scalar_lea.vmem [#allocation8], %s475
        %p477 = scmp.lt.s32.totalorder %s33, 1
        %s478 = scalar_select %p477, %s33, 1
        %s479 = smul.addr %s478, 4
        %s480 = smul.addr %s479, 4
        %s481 = scalar_lea.vmem %s1, %s480
        %p482 = scmp.lt.s32.totalorder %s33, 1
        %s483 = scalar_select %p482, %s33, 1
        %s484 = smul.addr %s483, 4
        %s485 = smul.addr %s484, 4
        %s486 = scalar_lea.vmem %s3, %s485
        %p487 = scmp.lt.s32.totalorder %s33, 1
        %s488 = scalar_select %p487, %s33, 1
        %s489 = smul.addr %s488, 4
        %s490 = smul.addr %s489, 4
        %s491 = scalar_lea.vmem %s4, %s490
        %p492 = scmp.lt.s32.totalorder %s33, 1
        %s493 = scalar_select %p492, %s33, 1
        %s494 = scalar_lea.vmem %s5, %s493
        %p495 = scmp.lt.s32.totalorder %s33, 1
        %s496 = scalar_select %p495, %s33, 1
        %s497 = smul.addr %s496, 8
        %s498 = smul.addr %s497, 4
        %s499 = scalar_lea.vmem %s6, %s498
        %p501 = scmp.eq.s32.totalorder %s33, 0
        // Predicated region
        $region65: #{tpu_custom_call.1} parent=51 // pred_check
          %p502 = pneg %p501
        $region66: #{tpu_custom_call.1} parent=51 // pred_check_branch
          %504 = sbr.rel (%p502) target = $region68
        $region67: #{tpu_custom_call.1} parent=51 // pred_region
          %v505 = vld [vmem:[%s392] sm:$0xff]
          %vm506 = vcmask 261120
          %507 = vst.msk [vmem:[%s476] sm:$0xff] %vm506, %v505
        $region68: #{tpu_custom_call.1} parent=51 // pred_fallthru
          _
        %v508 = vld [vmem:[%s411] sm:$0xff]
        %v509 = vld [vmem:[%s476] sm:$0xff]
        %v510 = vpack.c.bf16 %v509, %v509
        %v511 = vld [vmem:[%s481] sm:$0xf]
        %v512 = vld [vmem:[%s481 + $0x4] sm:$0xf]
        %v513 = vld [vmem:[%s481 + $0x8] sm:$0xf]
        %v514 = vld [vmem:[%s481 + $0xc] sm:$0xf]
        %v515 = vld [vmem:[%s401] sm:$0x1]
        %v517 = vperm.slane %v515, 0
        %v523 = vunpack.c.l.b16 %v511
        %v524 = vunpack.c.l.b16 %v512
        %v525 = vunpack.c.l.b16 %v513
        %v526 = vunpack.c.l.b16 %v514
        %v527 = vpack.c.b16 %v524, %v523
        %v528 = vpack.c.b16 %v526, %v525
        %vm531 = vcmask 261120
        %v533 = vsel %vm531, %v510, 0
        %535 = vmatpush.bf16.msra.mxu0 0
        %536 = vmatpush.bf16.msra.mxu0 0
        %537 = vmatpush.bf16.msra.mxu0 0
        %538 = vmatpush.bf16.msra.mxu0 0
        %539 = vmatpush.bf16.msra.mxu0 0
        %540 = vmatpush.bf16.msra.mxu0 0
        %541 = vmatpush.bf16.msra.mxu0 %v528
        %542 = vmatpush.bf16.msra.mxu0 %v527
        %543 = vmatmul.bf16.gmra.mxu0 %v533
        %v544 = vpop.f32.mrf.mxu0
        %v545 = vadd.f32 %v517, %v544
        %v546 = vpop.f32.mrf.mxu0
        %547 = vdwg.mxu0
        %v548 = vpack.c.bf16 %v545, %v545
        %v550 = vunpack.c.l.b16 %v548
        %v551 = vpack.c.b16 %v550, %v550
        %552 = vrot.lane.b32.xlu0 %v551, 96
        %v553 = vpop.permute.xlu0 %552
        %v555 = vsel %vm531, %v548, 0
        %v558 = vsel %vm531, %v553, 0
        %560 = vmatpush.bf16.xpose.msra.mxu0 0
        %561 = vmatpush.bf16.xpose.msra.mxu0 0
        %562 = vmatpush.bf16.xpose.msra.mxu0 0
        %563 = vmatpush.bf16.xpose.msra.mxu0 0
        %564 = vmatpush.bf16.xpose.msra.mxu0 0
        %565 = vmatpush.bf16.xpose.msra.mxu0 0
        %566 = vmatpush.bf16.xpose.msra.mxu0 0
        %567 = vmatpush.bf16.xpose.msra.mxu0 %v558
        %568 = vmatmul.bf16.gmra.mxu0 %v555
        %v569 = vpop.f32.mrf.mxu0
        %v570 = vadd.f32 0.0, %v569
        %v571 = vpop.f32.mrf.mxu0
        %572 = vdwg.mxu0
        %vm573 = vcmask 64512
        %v574 = vsel %vm573, %v570, -inf
        %575 = vmax.xlane.f32.xlu0 %v574
        %v576 = vpop.xlane.xlu0 %575
        %v577 = vsub.f32 %v570, %v576
        %v578 = vmul.f32 %v577, 1.442695
        %v579 = vpow.pop %v578
        %v580 = vsel %vm573, %v579, 0.0
        %581 = vadd.xlane.f32.xlu0 %v580
        %v582 = vpop.xlane.xlu0 %581
        %v583 = vpack.c.bf16 %v579, %v579
        %584 = vrot.lane.b32.xlu0 %v551, 64
        %v585 = vpop.permute.xlu0 %584
        %v587 = vsel %vm573, %v583, 0
        %vm589 = vcmask 1043456
        %v591 = vsel %vm589, %v585, 0
        %593 = vmatpush.bf16.msra.mxu0 0
        %594 = vmatpush.bf16.msra.mxu0 0
        %595 = vmatpush.bf16.msra.mxu0 0
        %596 = vmatpush.bf16.msra.mxu0 0
        %597 = vmatpush.bf16.msra.mxu0 0
        %598 = vmatpush.bf16.msra.mxu0 0
        %599 = vmatpush.bf16.msra.mxu0 0
        %600 = vmatpush.bf16.msra.mxu0 %v591
        %601 = vmatmul.bf16.gmra.mxu0 %v587
        %v602 = vpop.f32.mrf.mxu0
        %v603 = vadd.f32 0.0, %v602
        %v604 = vpop.f32.mrf.mxu0
        %605 = vdwg.mxu0
        %v606 = vrcp.pop %v582
        %v607 = vmul.f32 %v603, %v606
        %v608 = vpack.c.bf16 %v607, %v607
        %v609 = vld [vmem:[%s486] sm:$0xf]
        %v610 = vld [vmem:[%s486 + $0x4] sm:$0xf]
        %v611 = vld [vmem:[%s486 + $0x8] sm:$0xf]
        %v612 = vld [vmem:[%s486 + $0xc] sm:$0xf]
        %v613 = vperm.slane %v508, 0
        %v618 = vunpack.c.l.b16 %v609
        %v619 = vunpack.c.l.b16 %v610
        %v620 = vunpack.c.l.b16 %v611
        %v621 = vunpack.c.l.b16 %v612
        %v622 = vpack.c.b16 %v619, %v618
        %v623 = vpack.c.b16 %v621, %v620
        %v627 = vsel %vm531, %v608, 0
        %629 = vmatpush.bf16.msra.mxu0 0
        %630 = vmatpush.bf16.msra.mxu0 0
        %631 = vmatpush.bf16.msra.mxu0 0
        %632 = vmatpush.bf16.msra.mxu0 0
        %633 = vmatpush.bf16.msra.mxu0 0
        %634 = vmatpush.bf16.msra.mxu0 0
        %635 = vmatpush.bf16.msra.mxu0 %v623
        %636 = vmatpush.bf16.msra.mxu0 %v622
        %637 = vmatmul.bf16.gmra.mxu0 %v627
        %v638 = vpop.f32.mrf.mxu0
        %v639 = vadd.f32 %v613, %v638
        %v640 = vpop.f32.mrf.mxu0
        %641 = vdwg.mxu0
        %v642 = vadd.f32 %v509, %v639
        %v643 = vsel %vm531, %v642, 0.0
        %644 = vadd.xlane.f32.xlu0 %v643
        %v645 = vpop.xlane.xlu0 %644
        %v646 = vrcp.pop 32.0
        %v647 = vmul.f32 32.0, %v646
        %v648 = vsub.f32 1.0, %v647
        %v649 = vmul.f32 %v646, %v648
        %v650 = vadd.f32 %v646, %v649
        %vm651 = vweird.f32 %v646
        %v652 = vsel %vm651, %v646, %v650
        %v653 = vmul.f32 %v645, %v652
        %v654 = vmul.f32 %v642, %v642
        %v655 = vsel %vm531, %v654, 0.0
        %656 = vadd.xlane.f32.xlu0 %v655
        %v657 = vpop.xlane.xlu0 %656
        %v658 = vmul.f32 %v657, %v652
        %v659 = vmul.f32 %v653, %v653
        %v660 = vsub.f32 %v658, %v659
        %v661 = vadd.f32 %v660, 1e-05
        %v662 = vrsqrt.pop %v661
        %v663 = vmul.f32 %v662, %v661
        %v664 = vmul.f32 %v663, %v662
        %v665 = vmul.f32 0.5, %v664
        %v666 = vsub.f32 1.5, %v665
        %v667 = vmul.f32 %v662, %v666
        %vm668 = vweird.f32 %v661
        %vm669 = vweird.f32 %v662
        %vm670 = vmor %vm668, %vm669
        %v671 = vsel %vm670, %v662, %v667
        %v672 = vperm.slane %v508, 1
        %v673 = vmul.f32 %v671, %v672
        %v674 = vmul.f32 %v642, %v673
        %v675 = vmul.f32 %v653, %v673
        %v676 = vperm.slane %v508, 2
        %v677 = vsub.f32 %v676, %v675
        %v678 = vadd.f32 %v674, %v677
        %v679 = vpack.c.bf16 %v678, %v678
        %v680 = vld [vmem:[%s491] sm:$0xf]
        %v681 = vld [vmem:[%s491 + $0x4] sm:$0xf]
        %v682 = vld [vmem:[%s491 + $0x8] sm:$0xf]
        %v683 = vld [vmem:[%s491 + $0xc] sm:$0xf]
        %v684 = vld [vmem:[%s494] sm:$0x1]
        %v686 = vperm.slane %v684, 0
        %v692 = vunpack.c.l.b16 %v680
        %v693 = vunpack.c.l.b16 %v681
        %v694 = vunpack.c.l.b16 %v682
        %v695 = vunpack.c.l.b16 %v683
        %v696 = vpack.c.b16 %v693, %v692
        %v697 = vpack.c.b16 %v695, %v694
        %v701 = vsel %vm531, %v679, 0
        %703 = vmatpush.bf16.msra.mxu0 0
        %704 = vmatpush.bf16.msra.mxu0 0
        %705 = vmatpush.bf16.msra.mxu0 0
        %706 = vmatpush.bf16.msra.mxu0 0
        %707 = vmatpush.bf16.msra.mxu0 0
        %708 = vmatpush.bf16.msra.mxu0 0
        %709 = vmatpush.bf16.msra.mxu0 %v697
        %710 = vmatpush.bf16.msra.mxu0 %v696
        %711 = vmatmul.bf16.gmra.mxu0 %v701
        %v712 = vpop.f32.mrf.mxu0
        %v713 = vadd.f32 %v686, %v712
        %v714 = vpop.f32.mrf.mxu0
        %715 = vdwg.mxu0
        %v716 = vmax.f32 %v713, 0.0
        %v717 = vpack.c.bf16 %v716, %v716
        %v718 = vld [vmem:[%s499] sm:$0xf]
        %v719 = vld [vmem:[%s499 + $0x4] sm:$0xf]
        %v720 = vld [vmem:[%s499 + $0x8] sm:$0xf]
        %v721 = vld [vmem:[%s499 + $0xc] sm:$0xf]
        %v722 = vld [vmem:[%s499 + $0x10] sm:$0xf]
        %v723 = vld [vmem:[%s499 + $0x14] sm:$0xf]
        %v724 = vld [vmem:[%s499 + $0x18] sm:$0xf]
        %v725 = vld [vmem:[%s499 + $0x1c] sm:$0xf]
        %v726 = vperm.slane %v508, 3
        %v735 = vunpack.c.l.b16 %v718
        %v736 = vunpack.c.l.b16 %v719
        %v737 = vunpack.c.l.b16 %v720
        %v738 = vunpack.c.l.b16 %v721
        %v739 = vunpack.c.l.b16 %v722
        %v740 = vunpack.c.l.b16 %v723
        %v741 = vunpack.c.l.b16 %v724
        %v742 = vunpack.c.l.b16 %v725
        %v743 = vpack.c.b16 %v736, %v735
        %v744 = vpack.c.b16 %v738, %v737
        %v745 = vpack.c.b16 %v740, %v739
        %v746 = vpack.c.b16 %v742, %v741
        %vm751 = vcmask 523264
        %v753 = vsel %vm751, %v717, 0
        %755 = vmatpush.bf16.msra.mxu0 0
        %756 = vmatpush.bf16.msra.mxu0 0
        %757 = vmatpush.bf16.msra.mxu0 0
        %758 = vmatpush.bf16.msra.mxu0 0
        %759 = vmatpush.bf16.msra.mxu0 %v746
        %760 = vmatpush.bf16.msra.mxu0 %v745
        %761 = vmatpush.bf16.msra.mxu0 %v744
        %762 = vmatpush.bf16.msra.mxu0 %v743
        %763 = vmatmul.bf16.gmra.mxu0 %v753
        %v764 = vpop.f32.mrf.mxu0
        %v765 = vadd.f32 %v726, %v764
        %v766 = vpop.f32.mrf.mxu0
        %767 = vdwg.mxu0
        %v768 = vadd.f32 %v678, %v765
        %v769 = vsel %vm531, %v768, 0.0
        %770 = vadd.xlane.f32.xlu0 %v769
        %v771 = vpop.xlane.xlu0 %770
        %v772 = vmul.f32 %v771, %v652
        %v773 = vmul.f32 %v768, %v768
        %v774 = vsel %vm531, %v773, 0.0
        %775 = vadd.xlane.f32.xlu0 %v774
        %v776 = vpop.xlane.xlu0 %775
        %v777 = vmul.f32 %v776, %v652
        %v778 = vmul.f32 %v772, %v772
        %v779 = vsub.f32 %v777, %v778
        %v780 = vadd.f32 %v779, 1e-05
        %v781 = vrsqrt.pop %v780
        %v782 = vmul.f32 %v781, %v780
        %v783 = vmul.f32 %v782, %v781
        %v784 = vmul.f32 0.5, %v783
        %v785 = vsub.f32 1.5, %v784
        %v786 = vmul.f32 %v781, %v785
        %vm787 = vweird.f32 %v780
        %vm788 = vweird.f32 %v781
        %vm789 = vmor %vm787, %vm788
        %v790 = vsel %vm789, %v781, %v786
        %v791 = vperm.slane %v508, 4
        %v792 = vmul.f32 %v790, %v791
        %v793 = vmul.f32 %v768, %v792
        %v794 = vmul.f32 %v772, %v792
        %v795 = vperm.slane %v508, 5
        %v796 = vsub.f32 %v795, %v794
        %v797 = vadd.f32 %v793, %v796
        %798 = vst.msk [vmem:[%s476] sm:$0xff] %vm531, %v797
        %s799 = sand.u32 %s256, 1
        %s800 = scalar_lea.sflag [#allocation4], %s799
        %s801 = sand.u32 %s256, 1
        %s802 = smul.addr %s801, 8
        %s803 = scalar_lea.vmem [#allocation8], %s802
        // Predicated region
        $region69: #{tpu_custom_call.1} parent=51 // pred_check
          %p804 = pneg %p266
        $region70: #{tpu_custom_call.1} parent=51 // pred_check_branch
          %806 = sbr.rel (%p804) target = $region72
        $region71: #{tpu_custom_call.1} parent=51 // pred_region
          %808 = vsyncadd %s800, 0
          %s809 = smul.addr %s32, 8
          %s810 = scalar_lea.hbm %s8, %s809
          %s812 = sshll.u32 %s803, 4
          %s813 = int_to_ptr.vmem [resolvable:$true] %s812
          %s814 = sshll.u32 %s810, 4
          %s815 = int_to_ptr.hbm [resolvable:$true] %s814
          %817 = dma.vmem_to_hbm [thread:$0]  %s813, 128, %s815, %s800
        $region72: #{tpu_custom_call.1} parent=51 // pred_fallthru
          _
      $region52: #{tpu_custom_call.1} parent=5 // pred_fallthru
        _
      %p818 = scmp.le.s32.totalorder 2, %s23
      // Predicated region
      $region73: #{tpu_custom_call.1} parent=5 // pred_check
        %p819 = pneg %p818
      $region74: #{tpu_custom_call.1} parent=5 // pred_check_branch
        %821 = sbr.rel (%p819) target = $region76
      $region75: #{tpu_custom_call.1} parent=5 // pred_region
        %s822 = ssub.s32 %s23, 2
        // Predicated region
        $region77: #{tpu_custom_call.1} parent=75 // pred_check
          %p823 = pneg %p272
        $region78: #{tpu_custom_call.1} parent=75 // pred_check_branch
          %825 = sbr.rel (%p823) target = $region80
        $region79: #{tpu_custom_call.1} parent=75 // pred_region
          %s826 = sand.u32 %s257, 1
          %s827 = scalar_lea.sflag [#allocation4], %s826
          %s828 = sand.u32 %s257, 1
          %s829 = smul.addr %s828, 8
          %s830 = scalar_lea.vmem [#allocation8], %s829
          %832 = dma.done %s827, 128
        $region80: #{tpu_custom_call.1} parent=75 // pred_fallthru
          _
      $region76: #{tpu_custom_call.1} parent=5 // pred_fallthru
        _
    $region6: #{tpu_custom_call.1} parent=1 // loop_footer
      %s27 = sadd.s32 1, %s23
    $region7: #{tpu_custom_call.1} parent=1 // loop_footer_branch
      %22 = sbr.rel target = $region3
    $region8: #{tpu_custom_call.1} parent=1 // loop_exit
      _
    %833 = vsyncpa [#allocation3], 1
    %s834 = scalar_lea.sflag [#allocation3], 1
    %835 = vsyncpa %s834, 1
    %836 = vsyncpa [#allocation6], 1
    %s837 = scalar_lea.sflag [#allocation6], 1
    %838 = vsyncpa %s837, 1
    %839 = vsyncpa [#allocation4], 1
    %s840 = scalar_lea.sflag [#allocation4], 1
    %841 = vsyncpa %s840, 1

</llo_original>
